<compile_context>
chip_gen: v5e
topology: v5e:2x2
jax: 0.10.0
libtpu: 0.0.40
codegen_flags: <defaults>
</compile_context>

<pallas_src>
import functools

import numpy as np
import jax
import jax.numpy as jnp
from jax import lax
from jax.experimental import pallas as pl
from jax.experimental.pallas import tpu as pltpu


def _round_up(x, m):
    return (x + m - 1) // m * m


def _fm_kernel(bias_ref, idx_ref, tableT_ref, out_ref, *, emb_dim, num_fields):
    """One batch tile; batch on the lane (last) dimension.

    bias_ref:   SMEM (1, 1) f32
    idx_ref:    VMEM (F, TB) int32   -- global (offset-added) feature ids
    tableT_ref: VMEM (C_pad, V_pad) f32, rows:
                  [0:D)      emb_table^T
                  [D:2D)     (emb_table**2)^T
                  [2D]       linear weight^T
                (padding rows/cols are zero)
    out_ref:    VMEM (1, TB) f32     -- lane-dense output slab
    """
    D = emb_dim
    F = num_fields
    idx = idx_ref[...]                                    # (F, TB) int32
    V_pad = tableT_ref.shape[1]
    TB = idx.shape[1]

    # Fused gather: one-hot count matrix M[v, b] = #{f : idx[f, b] == v}.
    viota = lax.broadcasted_iota(jnp.int32, (V_pad, TB), 0)
    m = (viota == idx[0:1, :]).astype(jnp.float32)
    for f in range(1, F):                                  # F is small & static
        m = m + (viota == idx[f:f + 1, :]).astype(jnp.float32)

    # Single MXU matmul gives all three field-sums at once:  (C_pad, TB)
    svl = jnp.dot(tableT_ref[...], m, preferred_element_type=jnp.float32)

    s = svl[0:D, :]                    # sum_f v_f        (D, TB)
    sq = svl[D:2 * D, :]               # sum_f v_f**2     (D, TB)
    lin = svl[2 * D:2 * D + 1, :]      # sum_f w_f        (1, TB)

    fm2 = 0.5 * jnp.sum(s * s - sq, axis=0, keepdims=True)   # (1, TB)
    out_ref[...] = (lin + fm2 + bias_ref[0, 0]).astype(out_ref.dtype)


def fm_forward(x, emb_table, lin_table, bias, offsets, *, tile_b=128):
    """FM forward: x (B, F) int32 field-local indices -> (B, 1) f32."""
    B, F = x.shape
    V, D = emb_table.shape
    TB = tile_b

    # Global indices, zero-pad batch to a tile multiple, batch-on-lanes layout.
    idx = (x + offsets[None, :]).astype(jnp.int32)            # (B, F)
    B_pad = _round_up(max(B, TB), TB)
    idx = jnp.pad(idx, ((0, B_pad - B), (0, 0)))              # pad rows use id 0 (valid)
    idx_t = idx.T                                             # (F, B_pad)

    # Packed, transposed lookup table: [emb ; emb**2 ; w] -> (2D+1, V), zero-pad.
    w = lin_table.reshape(V, 1).astype(jnp.float32)
    table = jnp.concatenate(
        [emb_table.astype(jnp.float32),
         (emb_table * emb_table).astype(jnp.float32),
         w], axis=1)                                          # (V, 2D+1)
    tableT = table.T                                          # (2D+1, V)
    C = 2 * D + 1
    C_pad = _round_up(C, 8)
    V_pad = _round_up(V, 128)
    tableT = jnp.pad(tableT, ((0, C_pad - C), (0, V_pad - V)))
    # TODO(synk): for vocabularies too large to keep resident in VMEM, switch to
    # a scalar-prefetch / pl.Element row-gather (or manual make_async_copy) path
    # instead of the one-hot MXU gather.

    bias2d = jnp.reshape(bias, (1, 1)).astype(jnp.float32)

    num_tiles = B_pad // TB
    kernel = functools.partial(_fm_kernel, emb_dim=D, num_fields=F)

    cost = pl.CostEstimate(
        flops=2 * B_pad * V_pad * C_pad + 4 * B_pad * D,
        transcendentals=0,
        bytes_accessed=(F * B_pad * 4            # indices
                        + C_pad * V_pad * 4      # packed table (loaded once)
                        + B_pad * 4))            # output

    out = pl.pallas_call(
        kernel,
        out_shape=jax.ShapeDtypeStruct((1, B_pad), jnp.float32),
        grid_spec=pltpu.PrefetchScalarGridSpec(
            num_scalar_prefetch=0,
            grid=(num_tiles,),
            in_specs=[
                pl.BlockSpec(memory_space=pltpu.SMEM),               # bias
                pl.BlockSpec((F, TB), lambda i: (0, i)),             # indices (batch on lanes)
                pl.BlockSpec((C_pad, V_pad), lambda i: (0, 0)),      # packed table, VMEM-resident
            ],
            out_specs=pl.BlockSpec((1, TB), lambda i: (0, i)),       # lane-dense output
        ),
        compiler_params=pltpu.CompilerParams(
            dimension_semantics=("parallel",)),
        cost_estimate=cost,
    )(bias2d, idx_t, tableT)

    return out.reshape(B_pad)[:B].reshape(B, 1)


def fm_reference(x, emb_table, lin_table, bias, offsets):
    idx = x + offsets[None, :]
    v = jnp.take(emb_table, idx, axis=0)                      # (B, F, D)
    w = jnp.take(lin_table[:, 0], idx, axis=0)                # (B, F)
    lin = jnp.sum(w, axis=1, keepdims=True) + bias
    s = jnp.sum(v, axis=1)
    sq = jnp.sum(v * v, axis=1)
    fm2 = 0.5 * jnp.sum(s * s - sq, axis=1, keepdims=True)
    return lin + fm2


if __name__ == "__main__":
    # Model config (synthetic, deterministic init)
    field_dims = [10, 20, 30, 40]          # F = 4 fields
    emb_dim = 8
    F = len(field_dims)
    vocab = int(np.sum(field_dims))
    offsets = jnp.asarray(
        np.concatenate([[0], np.cumsum(field_dims)[:-1]]), dtype=jnp.int32)

    key = jax.random.PRNGKey(0)
    k_emb, k_lin, k_x = jax.random.split(key, 3)
    emb_table = jax.random.normal(k_emb, (vocab, emb_dim), jnp.float32) * 0.1
    lin_table = jax.random.normal(k_lin, (vocab, 1), jnp.float32) * 0.1
    bias = jnp.zeros((1,), jnp.float32)

    # Two batch sizes: one exercising the tail-padding path, one exact multiple.
    for batch in (300, 256):
        cols = []
        for f, fd in enumerate(field_dims):
            kf = jax.random.fold_in(k_x, f)
            cols.append(jax.random.randint(kf, (batch, 1), 0, fd, dtype=jnp.int32))
        x = jnp.concatenate(cols, axis=1)     # (B, F) int32 field-local indices

        out = fm_forward(x, emb_table, lin_table, bias, offsets, tile_b=128)
        out = jax.block_until_ready(out)

        ref = fm_reference(x, emb_table, lin_table, bias, offsets)
        assert out.shape == (batch, 1)
        np.testing.assert_allclose(np.asarray(out), np.asarray(ref),
                                   rtol=1e-4, atol=1e-5)

    print("KERNEL_OK")
</pallas_src>

<mosaic_0001>
module attributes {stable_mosaic.version = 11 : i64} {
  func.func @_fm_kernel(%arg0: i32, %arg1: memref<1x1xf32, #tpu.memory_space<smem>>, %arg2: memref<4x128xi32, #tpu.memory_space<vmem>>, %arg3: memref<24x128xf32, #tpu.memory_space<vmem>>, %arg4: memref<1x128xf32, #tpu.memory_space<vmem>>) attributes {dimension_semantics = [#tpu.dimension_semantics<parallel>], iteration_bounds = array<i64: 3>, scalar_prefetch = 0 : i64, scratch_operands = 0 : i64, tpu.core_type = #tpu.core_type<tc>, window_params = [{transform_indices = @transform_0, window_bounds = array<i64: 1, 1>}, {transform_indices = @transform_1, window_bounds = array<i64: 4, 128>}, {pipeline_mode = #tpu.pipeline_mode<synchronous>, transform_indices = @transform_2, window_bounds = array<i64: 24, 128>}, {transform_indices = @transform_3, window_bounds = array<i64: 1, 128>}]} {
    %c0 = arith.constant 0 : index
    %c0_0 = arith.constant 0 : index
    %0 = vector.load %arg2[%c0, %c0_0] : memref<4x128xi32, #tpu.memory_space<vmem>>, vector<4x128xi32>
    %1 = tpu.iota {dimensions = array<i32: 0>} : vector<128x128xi32>
    %2 = vector.extract_strided_slice %0 {offsets = [0, 0], sizes = [1, 128], strides = [1, 1]} : vector<4x128xi32> to vector<1x128xi32>
    %3 = vector.broadcast %2 : vector<1x128xi32> to vector<128x128xi32>
    %4 = arith.cmpi eq, %1, %3 : vector<128x128xi32>
    %5 = arith.extui %4 : vector<128x128xi1> to vector<128x128xi32>
    %6 = arith.sitofp %5 : vector<128x128xi32> to vector<128x128xf32>
    %7 = vector.extract_strided_slice %0 {offsets = [1, 0], sizes = [1, 128], strides = [1, 1]} : vector<4x128xi32> to vector<1x128xi32>
    %8 = vector.broadcast %7 : vector<1x128xi32> to vector<128x128xi32>
    %9 = arith.cmpi eq, %1, %8 : vector<128x128xi32>
    %10 = arith.extui %9 : vector<128x128xi1> to vector<128x128xi32>
    %11 = arith.sitofp %10 : vector<128x128xi32> to vector<128x128xf32>
    %12 = arith.addf %6, %11 : vector<128x128xf32>
    %13 = vector.extract_strided_slice %0 {offsets = [2, 0], sizes = [1, 128], strides = [1, 1]} : vector<4x128xi32> to vector<1x128xi32>
    %14 = vector.broadcast %13 : vector<1x128xi32> to vector<128x128xi32>
    %15 = arith.cmpi eq, %1, %14 : vector<128x128xi32>
    %16 = arith.extui %15 : vector<128x128xi1> to vector<128x128xi32>
    %17 = arith.sitofp %16 : vector<128x128xi32> to vector<128x128xf32>
    %18 = arith.addf %12, %17 : vector<128x128xf32>
    %19 = vector.extract_strided_slice %0 {offsets = [3, 0], sizes = [1, 128], strides = [1, 1]} : vector<4x128xi32> to vector<1x128xi32>
    %20 = vector.broadcast %19 : vector<1x128xi32> to vector<128x128xi32>
    %21 = arith.cmpi eq, %1, %20 : vector<128x128xi32>
    %22 = arith.extui %21 : vector<128x128xi1> to vector<128x128xi32>
    %23 = arith.sitofp %22 : vector<128x128xi32> to vector<128x128xf32>
    %24 = arith.addf %18, %23 : vector<128x128xf32>
    %c0_1 = arith.constant 0 : index
    %c0_2 = arith.constant 0 : index
    %25 = vector.load %arg3[%c0_1, %c0_2] : memref<24x128xf32, #tpu.memory_space<vmem>>, vector<24x128xf32>
    %cst = arith.constant dense<0.000000e+00> : vector<24x128xf32>
    %26 = tpu.matmul %25, %24, %cst {dimension_numbers = #tpu.dot_dimension_numbers<[1], [0], [0], [1], [0, 0, 1, 1], [], []>} : vector<24x128xf32>, vector<128x128xf32>, vector<24x128xf32> -> vector<24x128xf32>
    %27 = vector.extract_strided_slice %26 {offsets = [0, 0], sizes = [8, 128], strides = [1, 1]} : vector<24x128xf32> to vector<8x128xf32>
    %28 = vector.extract_strided_slice %26 {offsets = [8, 0], sizes = [8, 128], strides = [1, 1]} : vector<24x128xf32> to vector<8x128xf32>
    %29 = vector.extract_strided_slice %26 {offsets = [16, 0], sizes = [1, 128], strides = [1, 1]} : vector<24x128xf32> to vector<1x128xf32>
    %30 = arith.mulf %27, %27 : vector<8x128xf32>
    %31 = arith.subf %30, %28 : vector<8x128xf32>
    %cst_3 = arith.constant dense<0.000000e+00> : vector<128xf32>
    %32 = vector.multi_reduction <add>, %31, %cst_3 [0] : vector<8x128xf32> to vector<128xf32>
    %33 = vector.shape_cast %32 : vector<128xf32> to vector<1x128xf32>
    %cst_4 = arith.constant 5.000000e-01 : f32
    %34 = vector.broadcast %cst_4 : f32 to vector<1x128xf32>
    %35 = arith.mulf %34, %33 : vector<1x128xf32>
    %36 = arith.addf %29, %35 : vector<1x128xf32>
    %c0_5 = arith.constant 0 : index
    %c0_6 = arith.constant 0 : index
    %37 = memref.load %arg1[%c0_5, %c0_6] : memref<1x1xf32, #tpu.memory_space<smem>>
    %38 = vector.broadcast %37 : f32 to vector<1x128xf32>
    %39 = arith.addf %36, %38 : vector<1x128xf32>
    %c0_7 = arith.constant 0 : index
    %c0_8 = arith.constant 0 : index
    %40 = vector.load %arg4[%c0_7, %c0_8] : memref<1x128xf32, #tpu.memory_space<vmem>>, vector<1x128xf32>
    tpu.vector_store %arg4[%c0_7, %c0_8], %39 {strides = array<i32>} : memref<1x128xf32, #tpu.memory_space<vmem>>, vector<1x128xf32>,
    return
  }
  func.func @transform_0(%arg0: i32) -> (i32, i32) {
    %c0_i32 = arith.constant 0 : i32
    %c0_i32_0 = arith.constant 0 : i32
    %c0_i32_1 = arith.constant 0 : i32
    return %c0_i32, %c0_i32_0 : i32, i32
  }
  func.func @transform_1(%arg0: i32) -> (i32, i32) {
    %c0_i32 = arith.constant 0 : i32
    %c0_i32_0 = arith.constant 0 : i32
    return %c0_i32, %arg0 : i32, i32
  }
  func.func @transform_2(%arg0: i32) -> (i32, i32) {
    %c0_i32 = arith.constant 0 : i32
    %c0_i32_0 = arith.constant 0 : i32
    %c0_i32_1 = arith.constant 0 : i32
    return %c0_i32, %c0_i32_0 : i32, i32
  }
  func.func @transform_3(%arg0: i32) -> (i32, i32) {
    %c0_i32 = arith.constant 0 : i32
    %c0_i32_0 = arith.constant 0 : i32
    return %c0_i32, %arg0 : i32, i32
  }
}

</mosaic_0001>

<llo_original>
// kernel: tpu_custom_call.1
$region0: #{tpu_custom_call.1}
  #allocation0 [shape = 'u32[]', space=smem, size = 0x4, offset = 0x4, fixed_abs, tag = 'smem constant byte address 0x4 - core index']
  #allocation1 [shape = 'u32[72,128]{1,0:T(1,128)}', space=vmem, size = 0x9000, scoped, tag = 'internal scratch']
  #allocation2 [shape = 'f32[1,1]{1,0:T(1,128)S(6)}', space=smem, size = 0x200, scoped, tag = 'scoped memory for tpu_custom_call.1']
  %s0 = inlined_call_operand.<no memory space> [shape: f32[1,1], index: 0, kind: input, shape index: {}]
  %s1 = inlined_call_operand.hbm [shape: s32[4,384], index: 1, kind: input, shape index: {}]
  %s2 = inlined_call_operand.hbm [shape: f32[24,128], index: 2, kind: input, shape index: {}]
  %s3 = inlined_call_operand.hbm [shape: f32[1,384], index: 3, kind: output, shape index: {}]
  %s4 = sld [smem:[#allocation0]]
  $region53: #{tpu_custom_call.1} parent=0
    _
  %s6 = ssub.s32 1, %s4
  %s7 = scalar_select 0, %s6, %s4
  %8 = sst [smem:[#allocation2]] %s0
  $region1: #{tpu_custom_call.1} parent=0
    #allocation3 [shape = 'u8[4096]{0}', space=vmem, size = 0x1000, scoped, tag = 'input window, operand 1']
    #allocation4 [shape = 's32[2]{0}', space=sflag, size = 0x8, scoped, tag = 'scoped memory for tpu_custom_call.1']
    #allocation5 [shape = 's32[2]{0}', space=sflag, size = 0x8, scoped, tag = 'scoped memory for tpu_custom_call.1']
    #allocation6 [shape = 'u8[12288]{0}', space=vmem, size = 0x3000, scoped, tag = 'input window, operand 2, single buffered']
    #allocation7 [shape = 's32[1]{0}', space=sflag, size = 0x4, scoped, tag = 'scoped memory for tpu_custom_call.1']
    #allocation8 [shape = 'u8[1024]{0}', space=vmem, size = 0x400, scoped, tag = 'output window, operand 0']
    %9 = vsyncpa [#allocation4], 0
    %s10 = scalar_lea.sflag [#allocation4], 1
    %11 = vsyncpa %s10, 0
    %12 = vsyncpa [#allocation7], 0
    %13 = vsyncpa [#allocation5], 0
    %s14 = scalar_lea.sflag [#allocation5], 1
    %15 = vsyncpa %s14, 0
    loop: start=0, step=1, limit=5
    $region2: #{tpu_custom_call.1} parent=1 // loop_pre_header
      _
    $region3: #{tpu_custom_call.1} parent=1 // loop_header
      %s17 = sphi 0, %s21
      %p18 = scmp.ge.s32.totalorder %s17, 5
      %s25 = sphi 0, %s25
      %s27 = sphi 0, %s25
      %s28 = sphi 0, %s27
      %s42 = sphi 0, %s28
      %s48 = sphi 0, %s50
      %s51 = sphi 0, %s48
      %s52 = sphi 0, %s51
      %s68 = sphi 0, %s52
      %s72 = sphi 0, %s72
      %s74 = sphi 0, %s72
      %s75 = sphi 0, %s74
      %s89 = sphi 0, %s75
      %s95 = sphi 0, %s97
      %s98 = sphi 0, %s95
      %s99 = sphi 0, %s98
      %s115 = sphi 0, %s99
    $region4: #{tpu_custom_call.1} parent=1 // loop_header_branch
      %20 = sbr.rel (%p18) target = $region8
    $region5: #{tpu_custom_call.1} parent=1 // loop_body
      %s22 = ssub.s32 %s17, 1
      %s23 = ssub.s32 %s17, 2
      %s24 = sadd.s32 %s17, 1
      %s26 = sadd.s32 %s25, 1
      %p29 = scmp.eq.s32.totalorder %s17, 2
      %p30 = scmp.ne.s32.totalorder %s25, %s27
      %p31 = scmp.eq.s32.totalorder %s17, 0
      %p32 = por %p30, %p31
      %p33 = scmp.ne.s32.totalorder %s25, %s27
      %p34 = scmp.eq.s32.totalorder %s22, 2
      %p35 = por %p33, %p34
      %p36 = scmp.ne.s32.totalorder %s27, %s28
      %p37 = scmp.eq.s32.totalorder %s22, 0
      %p38 = por %p36, %p37
      %p39 = scmp.ne.s32.totalorder %s27, %s28
      %p40 = scmp.eq.s32.totalorder %s23, 2
      %p41 = por %p39, %p40
      %p43 = scmp.ne.s32.totalorder %s28, %s42
      %p44 = scmp.eq.s32.totalorder %s23, 0
      %p45 = por %p43, %p44
      %s46 = ssub.s32 %s17, %s24
      %p47 = scmp.eq.s32.totalorder %s46, 0
      %s49 = sadd.s32 %s48, 1
      %s50 = scalar_select %p47, %s48, %s49
      %p53 = pneg %p47
      %p54 = scmp.eq.s32.totalorder %s17, 2
      %p55 = por %p53, %p54
      %p56 = scmp.ne.s32.totalorder %s48, %s51
      %p57 = scmp.eq.s32.totalorder %s17, 0
      %p58 = por %p56, %p57
      %p59 = scmp.ne.s32.totalorder %s48, %s51
      %p60 = scmp.eq.s32.totalorder %s22, 2
      %p61 = por %p59, %p60
      %p62 = scmp.ne.s32.totalorder %s51, %s52
      %p63 = scmp.eq.s32.totalorder %s22, 0
      %p64 = por %p62, %p63
      %p65 = scmp.ne.s32.totalorder %s51, %s52
      %p66 = scmp.eq.s32.totalorder %s23, 2
      %p67 = por %p65, %p66
      %p69 = scmp.ne.s32.totalorder %s52, %s68
      %p70 = scmp.eq.s32.totalorder %s23, 0
      %p71 = por %p69, %p70
      %s73 = sadd.s32 %s72, 1
      %p76 = scmp.eq.s32.totalorder %s17, 2
      %p77 = scmp.ne.s32.totalorder %s72, %s74
      %p78 = scmp.eq.s32.totalorder %s17, 0
      %p79 = por %p77, %p78
      %p80 = scmp.ne.s32.totalorder %s72, %s74
      %p81 = scmp.eq.s32.totalorder %s22, 2
      %p82 = por %p80, %p81
      %p83 = scmp.ne.s32.totalorder %s74, %s75
      %p84 = scmp.eq.s32.totalorder %s22, 0
      %p85 = por %p83, %p84
      %p86 = scmp.ne.s32.totalorder %s74, %s75
      %p87 = scmp.eq.s32.totalorder %s23, 2
      %p88 = por %p86, %p87
      %p90 = scmp.ne.s32.totalorder %s75, %s89
      %p91 = scmp.eq.s32.totalorder %s23, 0
      %p92 = por %p90, %p91
      %s93 = ssub.s32 %s17, %s24
      %p94 = scmp.eq.s32.totalorder %s93, 0
      %s96 = sadd.s32 %s95, 1
      %s97 = scalar_select %p94, %s95, %s96
      %p100 = pneg %p94
      %p101 = scmp.eq.s32.totalorder %s17, 2
      %p102 = por %p100, %p101
      %p103 = scmp.ne.s32.totalorder %s95, %s98
      %p104 = scmp.eq.s32.totalorder %s17, 0
      %p105 = por %p103, %p104
      %p106 = scmp.ne.s32.totalorder %s95, %s98
      %p107 = scmp.eq.s32.totalorder %s22, 2
      %p108 = por %p106, %p107
      %p109 = scmp.ne.s32.totalorder %s98, %s99
      %p110 = scmp.eq.s32.totalorder %s22, 0
      %p111 = por %p109, %p110
      %p112 = scmp.ne.s32.totalorder %s98, %s99
      %p113 = scmp.eq.s32.totalorder %s23, 2
      %p114 = por %p112, %p113
      %p116 = scmp.ne.s32.totalorder %s99, %s115
      %p117 = scmp.eq.s32.totalorder %s23, 0
      %p118 = por %p116, %p117
      %p119 = scmp.le.s32.totalorder 1, %s17
      %p120 = scmp.lt.s32.totalorder %s17, 4
      %p121 = pnand %p119, %p120
      %p122 = pneg %p121
      // Predicated region
      $region9: #{tpu_custom_call.1} parent=5 // pred_check
        _
      $region10: #{tpu_custom_call.1} parent=5 // pred_check_branch
        %124 = sbr.rel (%p121) target = $region12
      $region11: #{tpu_custom_call.1} parent=5 // pred_region
        %s125 = ssub.s32 %s17, 1
        // Predicated region
        $region13: #{tpu_custom_call.1} parent=11 // pred_check
          %p126 = pneg %p38
        $region14: #{tpu_custom_call.1} parent=11 // pred_check_branch
          %128 = sbr.rel (%p126) target = $region16
        $region15: #{tpu_custom_call.1} parent=11 // pred_region
          _
        $region16: #{tpu_custom_call.1} parent=11 // pred_fallthru
          _
        // Predicated region
        $region17: #{tpu_custom_call.1} parent=11 // pred_check
          %p129 = pneg %p85
        $region18: #{tpu_custom_call.1} parent=11 // pred_check_branch
          %131 = sbr.rel (%p129) target = $region20
        $region19: #{tpu_custom_call.1} parent=11 // pred_region
          %133 = vsyncadd [#allocation7], 0
          %s134 = sshll.u32 %s2, 4
          %s135 = int_to_ptr.hbm [resolvable:$true] %s134
          %s136 = sshll.u32 [#allocation6], 4
          %s137 = int_to_ptr.vmem [resolvable:$true] %s136
          %142 = dma.hbm_to_vmem [thread:$0]  %s135, 384, %s137, [#allocation7], 128, 128, 8
        $region20: #{tpu_custom_call.1} parent=11 // pred_fallthru
          _
      $region12: #{tpu_custom_call.1} parent=5 // pred_fallthru
        _
      %p143 = scmp.lt.s32.totalorder %s17, 3
      // Predicated region
      $region21: #{tpu_custom_call.1} parent=5 // pred_check
        %p144 = pneg %p143
      $region22: #{tpu_custom_call.1} parent=5 // pred_check_branch
        %146 = sbr.rel (%p144) target = $region24
      $region23: #{tpu_custom_call.1} parent=5 // pred_region
        // Predicated region
        $region25: #{tpu_custom_call.1} parent=23 // pred_check
          %p147 = pneg %p58
        $region26: #{tpu_custom_call.1} parent=23 // pred_check_branch
          %149 = sbr.rel (%p147) target = $region28
        $region27: #{tpu_custom_call.1} parent=23 // pred_region
          %s150 = sand.u32 %s48, 1
          %s151 = scalar_lea.sflag [#allocation4], %s150
          %s152 = sand.u32 %s48, 1
          %s153 = smul.addr %s152, 4
          %s154 = scalar_lea.vmem [#allocation3], %s153
          %156 = vsyncadd %s151, 0
          %s157 = smul.addr %s17, 4
          %s158 = scalar_lea.hbm %s1, %s157
          %s160 = sshll.u32 %s158, 4
          %s161 = int_to_ptr.hbm [resolvable:$true] %s160
          %s162 = sshll.u32 %s154, 4
          %s163 = int_to_ptr.vmem [resolvable:$true] %s162
          %165 = dma.hbm_to_vmem [thread:$0]  %s161, 64, %s163, %s151
        $region28: #{tpu_custom_call.1} parent=23 // pred_fallthru
          _
      $region24: #{tpu_custom_call.1} parent=5 // pred_fallthru
        _
      %p166 = scmp.le.s32.totalorder 1, %s17
      %p167 = scmp.lt.s32.totalorder %s17, 4
      %p168 = pnand %p166, %p167
      %p169 = pneg %p168
      // Predicated region
      $region29: #{tpu_custom_call.1} parent=5 // pred_check
        _
      $region30: #{tpu_custom_call.1} parent=5 // pred_check_branch
        %171 = sbr.rel (%p168) target = $region32
      $region31: #{tpu_custom_call.1} parent=5 // pred_region
        %s172 = ssub.s32 %s17, 1
        %s173 = sand.u32 %s51, 1
        %s174 = scalar_lea.sflag [#allocation4], %s173
        %s175 = sand.u32 %s51, 1
        %s176 = smul.addr %s175, 4
        %s177 = scalar_lea.vmem [#allocation3], %s176
        // Predicated region
        $region33: #{tpu_custom_call.1} parent=31 // pred_check
          %p178 = pneg %p64
        $region34: #{tpu_custom_call.1} parent=31 // pred_check_branch
          %180 = sbr.rel (%p178) target = $region36
        $region35: #{tpu_custom_call.1} parent=31 // pred_region
          %182 = dma.done %s174, 64
        $region36: #{tpu_custom_call.1} parent=31 // pred_fallthru
          _
        // Predicated region
        $region37: #{tpu_custom_call.1} parent=31 // pred_check
          %p183 = pneg %p85
        $region38: #{tpu_custom_call.1} parent=31 // pred_check_branch
          %185 = sbr.rel (%p183) target = $region40
        $region39: #{tpu_custom_call.1} parent=31 // pred_region
          %187 = dma.done [#allocation7], 384
        $region40: #{tpu_custom_call.1} parent=31 // pred_fallthru
          _
        %p188 = pneg %p38
        %p189 = pneg %p35
        %s190 = sand.u32 %s51, 1
        %s191 = scalar_lea.sflag [#allocation4], %s190
        %s192 = sand.u32 %s51, 1
        %s193 = smul.addr %s192, 4
        %s194 = scalar_lea.vmem [#allocation3], %s193
        %p195 = pneg %p64
        %p196 = pneg %p61
        %p197 = pneg %p85
        %p198 = pneg %p82
        %p199 = pneg %p111
        %p200 = pneg %p108
        %s201 = sand.u32 %s98, 1
        %s202 = scalar_lea.sflag [#allocation5], %s201
        %s203 = sand.u32 %s98, 1
        %s204 = scalar_lea.vmem [#allocation8], %s203
        %v205 = vld [vmem:[%s177] sm:$0xf]
        %v206 = vlaneseq
        %v207 = vshrl.u32 %v206, 7
        %v208 = vadd.s32 %v207, 8
        %v209 = vadd.s32 %v207, 16
        %v210 = vadd.s32 %v207, 24
        %v211 = vadd.s32 %v207, 32
        %v212 = vadd.s32 %v207, 40
        %v213 = vadd.s32 %v207, 48
        %v214 = vadd.s32 %v207, 56
        %v215 = vadd.s32 %v207, 64
        %v216 = vadd.s32 %v207, 72
        %v217 = vadd.s32 %v207, 80
        %v218 = vadd.s32 %v207, 88
        %v219 = vadd.s32 %v207, 96
        %v220 = vadd.s32 %v207, 104
        %v221 = vadd.s32 %v207, 112
        %v222 = vadd.s32 %v207, 120
        %v223 = vperm.slane %v205, 0
        %vm224 = vcmp.eq.s32.totalorder %v207, %v223
        %vm225 = vcmp.eq.s32.totalorder %v208, %v223
        %vm226 = vcmp.eq.s32.totalorder %v209, %v223
        %vm227 = vcmp.eq.s32.totalorder %v210, %v223
        %vm228 = vcmp.eq.s32.totalorder %v211, %v223
        %vm229 = vcmp.eq.s32.totalorder %v212, %v223
        %vm230 = vcmp.eq.s32.totalorder %v213, %v223
        %vm231 = vcmp.eq.s32.totalorder %v214, %v223
        %vm232 = vcmp.eq.s32.totalorder %v215, %v223
        %vm233 = vcmp.eq.s32.totalorder %v216, %v223
        %vm234 = vcmp.eq.s32.totalorder %v217, %v223
        %vm235 = vcmp.eq.s32.totalorder %v218, %v223
        %vm236 = vcmp.eq.s32.totalorder %v219, %v223
        %vm237 = vcmp.eq.s32.totalorder %v220, %v223
        %vm238 = vcmp.eq.s32.totalorder %v221, %v223
        %vm239 = vcmp.eq.s32.totalorder %v222, %v223
        %v240 = vsel %vm224, 1, 0
        %v241 = vsel %vm225, 1, 0
        %v242 = vsel %vm226, 1, 0
        %v243 = vsel %vm227, 1, 0
        %v244 = vsel %vm228, 1, 0
        %v245 = vsel %vm229, 1, 0
        %v246 = vsel %vm230, 1, 0
        %v247 = vsel %vm231, 1, 0
        %v248 = vsel %vm232, 1, 0
        %v249 = vsel %vm233, 1, 0
        %v250 = vsel %vm234, 1, 0
        %v251 = vsel %vm235, 1, 0
        %v252 = vsel %vm236, 1, 0
        %v253 = vsel %vm237, 1, 0
        %v254 = vsel %vm238, 1, 0
        %v255 = vsel %vm239, 1, 0
        %v256 = vcvt.s32.f32 %v240
        %v257 = vcvt.s32.f32 %v241
        %v258 = vcvt.s32.f32 %v242
        %v259 = vcvt.s32.f32 %v243
        %v260 = vcvt.s32.f32 %v244
        %v261 = vcvt.s32.f32 %v245
        %v262 = vcvt.s32.f32 %v246
        %v263 = vcvt.s32.f32 %v247
        %v264 = vcvt.s32.f32 %v248
        %v265 = vcvt.s32.f32 %v249
        %v266 = vcvt.s32.f32 %v250
        %v267 = vcvt.s32.f32 %v251
        %v268 = vcvt.s32.f32 %v252
        %v269 = vcvt.s32.f32 %v253
        %v270 = vcvt.s32.f32 %v254
        %v271 = vcvt.s32.f32 %v255
        %v272 = vperm.slane %v205, 1
        %vm273 = vcmp.eq.s32.totalorder %v207, %v272
        %vm274 = vcmp.eq.s32.totalorder %v208, %v272
        %vm275 = vcmp.eq.s32.totalorder %v209, %v272
        %vm276 = vcmp.eq.s32.totalorder %v210, %v272
        %vm277 = vcmp.eq.s32.totalorder %v211, %v272
        %vm278 = vcmp.eq.s32.totalorder %v212, %v272
        %vm279 = vcmp.eq.s32.totalorder %v213, %v272
        %vm280 = vcmp.eq.s32.totalorder %v214, %v272
        %vm281 = vcmp.eq.s32.totalorder %v215, %v272
        %vm282 = vcmp.eq.s32.totalorder %v216, %v272
        %vm283 = vcmp.eq.s32.totalorder %v217, %v272
        %vm284 = vcmp.eq.s32.totalorder %v218, %v272
        %vm285 = vcmp.eq.s32.totalorder %v219, %v272
        %vm286 = vcmp.eq.s32.totalorder %v220, %v272
        %vm287 = vcmp.eq.s32.totalorder %v221, %v272
        %vm288 = vcmp.eq.s32.totalorder %v222, %v272
        %v289 = vsel %vm273, 1, 0
        %v290 = vsel %vm274, 1, 0
        %v291 = vsel %vm275, 1, 0
        %v292 = vsel %vm276, 1, 0
        %v293 = vsel %vm277, 1, 0
        %v294 = vsel %vm278, 1, 0
        %v295 = vsel %vm279, 1, 0
        %v296 = vsel %vm280, 1, 0
        %v297 = vsel %vm281, 1, 0
        %v298 = vsel %vm282, 1, 0
        %v299 = vsel %vm283, 1, 0
        %v300 = vsel %vm284, 1, 0
        %v301 = vsel %vm285, 1, 0
        %v302 = vsel %vm286, 1, 0
        %v303 = vsel %vm287, 1, 0
        %v304 = vsel %vm288, 1, 0
        %v305 = vcvt.s32.f32 %v289
        %v306 = vcvt.s32.f32 %v290
        %v307 = vcvt.s32.f32 %v291
        %v308 = vcvt.s32.f32 %v292
        %v309 = vcvt.s32.f32 %v293
        %v310 = vcvt.s32.f32 %v294
        %v311 = vcvt.s32.f32 %v295
        %v312 = vcvt.s32.f32 %v296
        %v313 = vcvt.s32.f32 %v297
        %v314 = vcvt.s32.f32 %v298
        %v315 = vcvt.s32.f32 %v299
        %v316 = vcvt.s32.f32 %v300
        %v317 = vcvt.s32.f32 %v301
        %v318 = vcvt.s32.f32 %v302
        %v319 = vcvt.s32.f32 %v303
        %v320 = vcvt.s32.f32 %v304
        %v321 = vadd.f32 %v256, %v305
        %v322 = vadd.f32 %v257, %v306
        %v323 = vadd.f32 %v258, %v307
        %v324 = vadd.f32 %v259, %v308
        %v325 = vadd.f32 %v260, %v309
        %v326 = vadd.f32 %v261, %v310
        %v327 = vadd.f32 %v262, %v311
        %v328 = vadd.f32 %v263, %v312
        %v329 = vadd.f32 %v264, %v313
        %v330 = vadd.f32 %v265, %v314
        %v331 = vadd.f32 %v266, %v315
        %v332 = vadd.f32 %v267, %v316
        %v333 = vadd.f32 %v268, %v317
        %v334 = vadd.f32 %v269, %v318
        %v335 = vadd.f32 %v270, %v319
        %v336 = vadd.f32 %v271, %v320
        %v337 = vperm.slane %v205, 2
        %vm338 = vcmp.eq.s32.totalorder %v207, %v337
        %vm339 = vcmp.eq.s32.totalorder %v208, %v337
        %vm340 = vcmp.eq.s32.totalorder %v209, %v337
        %vm341 = vcmp.eq.s32.totalorder %v210, %v337
        %vm342 = vcmp.eq.s32.totalorder %v211, %v337
        %vm343 = vcmp.eq.s32.totalorder %v212, %v337
        %vm344 = vcmp.eq.s32.totalorder %v213, %v337
        %vm345 = vcmp.eq.s32.totalorder %v214, %v337
        %vm346 = vcmp.eq.s32.totalorder %v215, %v337
        %vm347 = vcmp.eq.s32.totalorder %v216, %v337
        %vm348 = vcmp.eq.s32.totalorder %v217, %v337
        %vm349 = vcmp.eq.s32.totalorder %v218, %v337
        %vm350 = vcmp.eq.s32.totalorder %v219, %v337
        %vm351 = vcmp.eq.s32.totalorder %v220, %v337
        %vm352 = vcmp.eq.s32.totalorder %v221, %v337
        %vm353 = vcmp.eq.s32.totalorder %v222, %v337
        %v354 = vsel %vm338, 1, 0
        %v355 = vsel %vm339, 1, 0
        %v356 = vsel %vm340, 1, 0
        %v357 = vsel %vm341, 1, 0
        %v358 = vsel %vm342, 1, 0
        %v359 = vsel %vm343, 1, 0
        %v360 = vsel %vm344, 1, 0
        %v361 = vsel %vm345, 1, 0
        %v362 = vsel %vm346, 1, 0
        %v363 = vsel %vm347, 1, 0
        %v364 = vsel %vm348, 1, 0
        %v365 = vsel %vm349, 1, 0
        %v366 = vsel %vm350, 1, 0
        %v367 = vsel %vm351, 1, 0
        %v368 = vsel %vm352, 1, 0
        %v369 = vsel %vm353, 1, 0
        %v370 = vcvt.s32.f32 %v354
        %v371 = vcvt.s32.f32 %v355
        %v372 = vcvt.s32.f32 %v356
        %v373 = vcvt.s32.f32 %v357
        %v374 = vcvt.s32.f32 %v358
        %v375 = vcvt.s32.f32 %v359
        %v376 = vcvt.s32.f32 %v360
        %v377 = vcvt.s32.f32 %v361
        %v378 = vcvt.s32.f32 %v362
        %v379 = vcvt.s32.f32 %v363
        %v380 = vcvt.s32.f32 %v364
        %v381 = vcvt.s32.f32 %v365
        %v382 = vcvt.s32.f32 %v366
        %v383 = vcvt.s32.f32 %v367
        %v384 = vcvt.s32.f32 %v368
        %v385 = vcvt.s32.f32 %v369
        %v386 = vadd.f32 %v321, %v370
        %v387 = vadd.f32 %v322, %v371
        %v388 = vadd.f32 %v323, %v372
        %v389 = vadd.f32 %v324, %v373
        %v390 = vadd.f32 %v325, %v374
        %v391 = vadd.f32 %v326, %v375
        %v392 = vadd.f32 %v327, %v376
        %v393 = vadd.f32 %v328, %v377
        %v394 = vadd.f32 %v329, %v378
        %v395 = vadd.f32 %v330, %v379
        %v396 = vadd.f32 %v331, %v380
        %v397 = vadd.f32 %v332, %v381
        %v398 = vadd.f32 %v333, %v382
        %v399 = vadd.f32 %v334, %v383
        %v400 = vadd.f32 %v335, %v384
        %v401 = vadd.f32 %v336, %v385
        %v402 = vperm.slane %v205, 3
        %vm403 = vcmp.eq.s32.totalorder %v207, %v402
        %vm404 = vcmp.eq.s32.totalorder %v208, %v402
        %vm405 = vcmp.eq.s32.totalorder %v209, %v402
        %vm406 = vcmp.eq.s32.totalorder %v210, %v402
        %vm407 = vcmp.eq.s32.totalorder %v211, %v402
        %vm408 = vcmp.eq.s32.totalorder %v212, %v402
        %vm409 = vcmp.eq.s32.totalorder %v213, %v402
        %vm410 = vcmp.eq.s32.totalorder %v214, %v402
        %vm411 = vcmp.eq.s32.totalorder %v215, %v402
        %vm412 = vcmp.eq.s32.totalorder %v216, %v402
        %vm413 = vcmp.eq.s32.totalorder %v217, %v402
        %vm414 = vcmp.eq.s32.totalorder %v218, %v402
        %vm415 = vcmp.eq.s32.totalorder %v219, %v402
        %vm416 = vcmp.eq.s32.totalorder %v220, %v402
        %vm417 = vcmp.eq.s32.totalorder %v221, %v402
        %vm418 = vcmp.eq.s32.totalorder %v222, %v402
        %v419 = vsel %vm403, 1, 0
        %v420 = vsel %vm404, 1, 0
        %v421 = vsel %vm405, 1, 0
        %v422 = vsel %vm406, 1, 0
        %v423 = vsel %vm407, 1, 0
        %v424 = vsel %vm408, 1, 0
        %v425 = vsel %vm409, 1, 0
        %v426 = vsel %vm410, 1, 0
        %v427 = vsel %vm411, 1, 0
        %v428 = vsel %vm412, 1, 0
        %v429 = vsel %vm413, 1, 0
        %v430 = vsel %vm414, 1, 0
        %v431 = vsel %vm415, 1, 0
        %v432 = vsel %vm416, 1, 0
        %v433 = vsel %vm417, 1, 0
        %v434 = vsel %vm418, 1, 0
        %v435 = vcvt.s32.f32 %v419
        %v436 = vcvt.s32.f32 %v420
        %v437 = vcvt.s32.f32 %v421
        %v438 = vcvt.s32.f32 %v422
        %v439 = vcvt.s32.f32 %v423
        %v440 = vcvt.s32.f32 %v424
        %v441 = vcvt.s32.f32 %v425
        %v442 = vcvt.s32.f32 %v426
        %v443 = vcvt.s32.f32 %v427
        %v444 = vcvt.s32.f32 %v428
        %v445 = vcvt.s32.f32 %v429
        %v446 = vcvt.s32.f32 %v430
        %v447 = vcvt.s32.f32 %v431
        %v448 = vcvt.s32.f32 %v432
        %v449 = vcvt.s32.f32 %v433
        %v450 = vcvt.s32.f32 %v434
        %v451 = vadd.f32 %v386, %v435
        %v452 = vadd.f32 %v387, %v436
        %v453 = vadd.f32 %v388, %v437
        %v454 = vadd.f32 %v389, %v438
        %v455 = vadd.f32 %v390, %v439
        %v456 = vadd.f32 %v391, %v440
        %v457 = vadd.f32 %v392, %v441
        %v458 = vadd.f32 %v393, %v442
        %v459 = vadd.f32 %v394, %v443
        %v460 = vadd.f32 %v395, %v444
        %v461 = vadd.f32 %v396, %v445
        %v462 = vadd.f32 %v397, %v446
        %v463 = vadd.f32 %v398, %v447
        %v464 = vadd.f32 %v399, %v448
        %v465 = vadd.f32 %v400, %v449
        %v466 = vadd.f32 %v401, %v450
        %v467 = vld [vmem:[#allocation6] sm:$0xff]
        %v468 = vld [vmem:[#allocation6 + $0x8] sm:$0xff]
        %v469 = vld [vmem:[#allocation6 + $0x10] sm:$0xff]
        %470 = vmatpush.msra.mxu0 %v466
        %471 = vmatpush.msra.mxu0 %v465
        %472 = vmatpush.msra.mxu0 %v464
        %473 = vmatpush.msra.mxu0 %v463
        %474 = vmatpush.msra.mxu0 %v462
        %475 = vmatpush.msra.mxu0 %v461
        %476 = vmatpush.msra.mxu0 %v460
        %477 = vmatpush.msra.mxu0 %v459
        %478 = vmatpush.msra.mxu0 %v458
        %479 = vmatpush.msra.mxu0 %v457
        %480 = vmatpush.msra.mxu0 %v456
        %481 = vmatpush.msra.mxu0 %v455
        %482 = vmatpush.msra.mxu0 %v454
        %483 = vmatpush.msra.mxu0 %v453
        %484 = vmatpush.msra.mxu0 %v452
        %485 = vmatpush.msra.mxu0 %v451
        %486 = vmatmul.f32.gmra.mxu0 %v467
        %v487 = vpop.f32.mrf.mxu0
        %v488 = vadd.f32 0.0, %v487
        %489 = vmatmul.f32.gmra.mxu0 %v468
        %v490 = vpop.f32.mrf.mxu0
        %v491 = vadd.f32 0.0, %v490
        %492 = vmatmul.f32.gmra.mxu0 %v469
        %v493 = vpop.f32.mrf.mxu0
        %v494 = vadd.f32 0.0, %v493
        %495 = vdwg.mxu0
        %v496 = vmul.f32 %v488, %v488
        %v497 = vsub.f32 %v496, %v491
        %v498 = vrot.slane %v497, 4
        %v499 = vadd.f32 %v497, %v498
        %v500 = vrot.slane %v499, 2
        %v501 = vadd.f32 %v499, %v500
        %v502 = vrot.slane %v501, 1
        %v503 = vadd.f32 %v501, %v502
        %v504 = vmul.f32 %v503, 0.5
        %v505 = vadd.f32 %v494, %v504
        %s506 = sld [smem:[#allocation2]]
        %v507 = vstv %s506
        %v508 = vadd.f32 %v505, %v507
        %509 = vst [vmem:[%s204] sm:$0x1] %v508
        %s510 = sand.u32 %s98, 1
        %s511 = scalar_lea.sflag [#allocation5], %s510
        %s512 = sand.u32 %s98, 1
        %s513 = scalar_lea.vmem [#allocation8], %s512
        // Predicated region
        $region41: #{tpu_custom_call.1} parent=31 // pred_check
          %p514 = pneg %p108
        $region42: #{tpu_custom_call.1} parent=31 // pred_check_branch
          %516 = sbr.rel (%p514) target = $region44
        $region43: #{tpu_custom_call.1} parent=31 // pred_region
          %518 = vsyncadd %s511, 0
          %s519 = scalar_lea.hbm %s3, %s22
          %s521 = sshll.u32 %s513, 4
          %s522 = int_to_ptr.vmem [resolvable:$true] %s521
          %s523 = sshll.u32 %s519, 4
          %s524 = int_to_ptr.hbm [resolvable:$true] %s523
          %526 = dma.vmem_to_hbm [thread:$0]  %s522, 16, %s524, %s511
        $region44: #{tpu_custom_call.1} parent=31 // pred_fallthru
          _
      $region32: #{tpu_custom_call.1} parent=5 // pred_fallthru
        _
      %p527 = scmp.le.s32.totalorder 2, %s17
      // Predicated region
      $region45: #{tpu_custom_call.1} parent=5 // pred_check
        %p528 = pneg %p527
      $region46: #{tpu_custom_call.1} parent=5 // pred_check_branch
        %530 = sbr.rel (%p528) target = $region48
      $region47: #{tpu_custom_call.1} parent=5 // pred_region
        %s531 = ssub.s32 %s17, 2
        // Predicated region
        $region49: #{tpu_custom_call.1} parent=47 // pred_check
          %p532 = pneg %p114
        $region50: #{tpu_custom_call.1} parent=47 // pred_check_branch
          %534 = sbr.rel (%p532) target = $region52
        $region51: #{tpu_custom_call.1} parent=47 // pred_region
          %s535 = sand.u32 %s99, 1
          %s536 = scalar_lea.sflag [#allocation5], %s535
          %s537 = sand.u32 %s99, 1
          %s538 = scalar_lea.vmem [#allocation8], %s537
          %540 = dma.done %s536, 16
        $region52: #{tpu_custom_call.1} parent=47 // pred_fallthru
          _
      $region48: #{tpu_custom_call.1} parent=5 // pred_fallthru
        _
    $region6: #{tpu_custom_call.1} parent=1 // loop_footer
      %s21 = sadd.s32 1, %s17
    $region7: #{tpu_custom_call.1} parent=1 // loop_footer_branch
      %16 = sbr.rel target = $region3
    $region8: #{tpu_custom_call.1} parent=1 // loop_exit
      _
    %541 = vsyncpa [#allocation4], 1
    %s542 = scalar_lea.sflag [#allocation4], 1
    %543 = vsyncpa %s542, 1
    %544 = vsyncpa [#allocation7], 1
    %545 = vsyncpa [#allocation5], 1
    %s546 = scalar_lea.sflag [#allocation5], 1
    %547 = vsyncpa %s546, 1

</llo_original>
